<compile_context>
chip_gen: v5e
topology: v5e:2x2
jax: 0.10.0
libtpu: 0.0.40
codegen_flags: <defaults>
</compile_context>

<pallas_src>
import functools

import jax
import jax.numpy as jnp
import numpy as np
from jax.experimental import pallas as pl
from jax.experimental.pallas import tpu as pltpu

FEAT_PAD = 128                      # lane-dense width for all feature dims
TILE_M = 256                        # row tile (keeps >=2 tiles for megacore asap)
VMEM_LIMIT = 48 * 1024 * 1024       # safe on v5e/v6e (128 MiB) and v7x (64 MiB)
X_RESIDENT_MAX_BYTES = 8 * 1024 * 1024  # per-buffer cap for VMEM-resident X/H1


def _round_up(x, m):
    return ((x + m - 1) // m) * m


def _pick_tk(n_pad):
    for tk in (2048, 1024, 512, 256):
        if tk <= n_pad and n_pad % tk == 0:
            return tk
    return n_pad


# ---------------------------------------------------------------------------
# Kernels
# ---------------------------------------------------------------------------
def _conv_kernel(ks_ref, kc_ref, a_ref, x_ref, w_ref, b_ref, *rest,
                 tk, x_resident, pool):
    """One GCNConv tile: relu((sum_k A[i,k] @ X[k]) @ W + b), optionally fused
    with the pooling partial P[:, rows_i] @ H for global_mean_pool."""
    if pool:
        p_ref, out_ref, acc_ref = rest
    else:
        out_ref, acc_ref = rest

    i = pl.program_id(0)
    k = pl.program_id(1)

    @pl.when(k == 0)
    def _():
        acc_ref[...] = jnp.zeros_like(acc_ref)

    # Skip all-zero A column tiles (block-diagonal A_hat).
    @pl.when(k < kc_ref[i])
    def _():
        if x_resident:
            kblk = ks_ref[i] + jnp.minimum(k, kc_ref[i] - 1)
            start = pl.multiple_of(kblk * tk, tk)
            x_blk = x_ref[pl.ds(start, tk), :]
        else:
            x_blk = x_ref[...]
        # bf16 MXU matmul, f32 accumulation.
        acc_ref[...] += jnp.dot(a_ref[...], x_blk,
                                preferred_element_type=jnp.float32)

    @pl.when(k == pl.num_programs(1) - 1)
    def _():
        # Epilogue in full f32 (tiny tm x 128 x 128 matmul).
        h = jnp.dot(acc_ref[...], w_ref[...],
                    preferred_element_type=jnp.float32) + b_ref[...]
        h = jnp.maximum(h, 0.0)
        if pool:
            # Per-row-tile pooled partial sums (summed + scaled in the head).
            out_ref[0, :, :] = jnp.dot(p_ref[...], h,
                                       preferred_element_type=jnp.float32)
        else:
            out_ref[...] = h.astype(out_ref.dtype)


def head_kernel(part_ref, inv_ref, wl1_ref, bl1_ref, wl2_ref, bl2_ref,
                o_ref, acc_ref):
    """Sum pooled partials over row tiles, mean-scale, then lin1+ReLU+lin2."""
    t = pl.program_id(0)

    @pl.when(t == 0)
    def _():
        acc_ref[...] = jnp.zeros_like(acc_ref)

    acc_ref[...] += part_ref[0, :, :]

    @pl.when(t == pl.num_programs(0) - 1)
    def _():
        pooled = acc_ref[...] * inv_ref[...]          # mean pool, f32
        # dropout(p=0.3) in eval mode (self.training == False) is the identity.
        z = jnp.dot(pooled, wl1_ref[...],
                    preferred_element_type=jnp.float32) + bl1_ref[...]
        z = jnp.maximum(z, 0.0)
        o_ref[...] = (jnp.dot(z, wl2_ref[...],
                              preferred_element_type=jnp.float32)
                      + bl2_ref[...])


# ---------------------------------------------------------------------------
# pallas_call wrappers
# ---------------------------------------------------------------------------
def gcn_conv(a, x, w, b, kstart, kcount, max_kc, *, tm, tk, x_resident, p=None):
    """relu((A @ X) @ W + b); if p is given, returns pooled partials instead of H.

    a: [n_pad, n_pad] bf16, x: [n_pad, F] bf16, w: [F, F] f32, b: [1, F] f32,
    p: [g_pad, n_pad] f32 one-hot (optional).
    """
    n_pad = a.shape[0]
    f = x.shape[1]
    nrt = n_pad // tm
    grid = (nrt, max_kc)

    def a_map(i, k, ks, kc):
        return (i, ks[i] + jnp.minimum(k, kc[i] - 1))

    if x_resident:
        x_spec = pl.BlockSpec((n_pad, f), lambda i, k, ks, kc: (0, 0))
    else:
        x_spec = pl.BlockSpec(
            (tk, f), lambda i, k, ks, kc: (ks[i] + jnp.minimum(k, kc[i] - 1), 0))

    in_specs = [
        pl.BlockSpec((tm, tk), a_map),                       # A tile (skipped)
        x_spec,                                              # X resident/stream
        pl.BlockSpec((f, f), lambda i, k, ks, kc: (0, 0)),   # W resident
        pl.BlockSpec((1, f), lambda i, k, ks, kc: (0, 0)),   # b resident
    ]
    args = [kstart, kcount, a, x, w, b]

    pool = p is not None
    if pool:
        g_pad = p.shape[0]
        in_specs.append(pl.BlockSpec((g_pad, tm), lambda i, k, ks, kc: (0, i)))
        args.append(p)
        out_shape = jax.ShapeDtypeStruct((nrt, g_pad, f), jnp.float32)
        out_spec = pl.BlockSpec((1, g_pad, f), lambda i, k, ks, kc: (i, 0, 0))
    else:
        out_shape = jax.ShapeDtypeStruct((n_pad, f), jnp.bfloat16)
        out_spec = pl.BlockSpec((tm, f), lambda i, k, ks, kc: (i, 0))

    kernel = functools.partial(_conv_kernel, tk=tk, x_resident=x_resident,
                               pool=pool)
    return pl.pallas_call(
        kernel,
        out_shape=out_shape,
        grid_spec=pltpu.PrefetchScalarGridSpec(
            num_scalar_prefetch=2,
            grid=grid,
            in_specs=in_specs,
            out_specs=out_spec,
            scratch_shapes=[pltpu.VMEM((tm, f), jnp.float32)],
        ),
        compiler_params=pltpu.CompilerParams(
            dimension_semantics=("parallel", "arbitrary"),
            vmem_limit_bytes=VMEM_LIMIT,
        ),
    )(*args)


def gcn_head(parts, inv, wl1, bl1, wl2, bl2):
    """Sum pooled partials + mean-scale + lin1 + ReLU + lin2 (all tiny)."""
    t, g, f = parts.shape
    return pl.pallas_call(
        head_kernel,
        out_shape=jax.ShapeDtypeStruct((g, f), jnp.float32),
        grid_spec=pltpu.PrefetchScalarGridSpec(
            num_scalar_prefetch=0,
            grid=(t,),
            in_specs=[
                pl.BlockSpec((1, g, f), lambda i: (i, 0, 0)),  # partial tile
                pl.BlockSpec((g, f), lambda i: (0, 0)),        # 1/count resident
                pl.BlockSpec((f, f), lambda i: (0, 0)),        # WL1
                pl.BlockSpec((1, f), lambda i: (0, 0)),        # bl1
                pl.BlockSpec((f, f), lambda i: (0, 0)),        # WL2
                pl.BlockSpec((1, f), lambda i: (0, 0)),        # bl2
            ],
            out_specs=pl.BlockSpec((g, f), lambda i: (0, 0)),
            scratch_shapes=[pltpu.VMEM((g, f), jnp.float32)],
        ),
        compiler_params=pltpu.CompilerParams(
            dimension_semantics=("arbitrary",),
            vmem_limit_bytes=VMEM_LIMIT,
        ),
    )(parts, inv, wl1, bl1, wl2, bl2)


# ---------------------------------------------------------------------------
# Plain-JAX / host preprocessing (graph -> dense operands + tile schedule)
# ---------------------------------------------------------------------------
def build_normalized_adj_padded(edge_index, edge_weight, num_nodes, n_pad):
    """PyG gcn_norm (add_self_loops=True), scattered straight into the padded
    buffer and cast to bf16 once.  A_hat[dst, src] = d_dst^-1/2 * w * d_src^-1/2."""
    src = edge_index[0]
    dst = edge_index[1]
    loop = jnp.arange(num_nodes, dtype=src.dtype)
    src = jnp.concatenate([src, loop])
    dst = jnp.concatenate([dst, loop])
    ew = jnp.concatenate([edge_weight,
                          jnp.ones((num_nodes,), dtype=edge_weight.dtype)])
    deg = jnp.zeros((num_nodes,), dtype=jnp.float32).at[dst].add(ew)
    dinv = jnp.where(deg > 0, 1.0 / jnp.sqrt(deg), 0.0)
    norm = dinv[src] * ew * dinv[dst]
    a_hat = jnp.zeros((n_pad, n_pad), dtype=jnp.float32).at[dst, src].add(norm)
    return a_hat.astype(jnp.bfloat16)


def _pad2d(a, rows, cols, dtype):
    out = jnp.zeros((rows, cols), dtype=dtype)
    return out.at[:a.shape[0], :a.shape[1]].set(a.astype(dtype))


def _tile_schedule(batch_np, edge_np, n, n_pad, tm, tk, num_graphs):
    """Per-row-tile reduction ranges [kstart, kstart+kcount) over A column tiles.

    Assumes PyG batching (node-contiguous disjoint graphs); falls back to the
    full range if the batch is unsorted or cross-graph edges exist.
    """
    nrt = n_pad // tm
    nkb = n_pad // tk
    kstart = np.zeros((nrt,), np.int32)
    kcount = np.ones((nrt,), np.int32)

    sorted_batch = n <= 1 or bool(np.all(np.diff(batch_np) >= 0))
    cross = False
    if edge_np.size:
        cross = bool(np.any(batch_np[edge_np[0]] != batch_np[edge_np[1]]))
    if not sorted_batch or cross:
        kstart[:] = 0
        kcount[:] = nkb
        return kstart, kcount, nkb

    gids = np.arange(num_graphs)
    g_start = np.searchsorted(batch_np, gids, side="left")
    g_end = np.searchsorted(batch_np, gids, side="right")
    for i in range(nrt):
        r0 = i * tm
        r1 = min(r0 + tm, n)
        if r0 >= n:                      # all-padding row tile: A rows are zero
            kstart[i], kcount[i] = 0, 1
            continue
        lo = int(g_start[int(batch_np[r0])])
        hi = int(g_end[int(batch_np[r1 - 1])])
        ks = lo // tk
        ke = -(-hi // tk)
        kstart[i] = ks
        kcount[i] = max(ke - ks, 1)
    return kstart, kcount, int(kcount.max())


def gcn_forward(x, edge_index, edge_weight, batch, num_graphs, params):
    n, in_feats = x.shape
    hidden = params["w1"].shape[1]
    out_feats = params["wl2"].shape[1]
    assert max(in_feats, hidden, out_feats) <= FEAT_PAD

    n_pad = _round_up(max(n, 1), TILE_M)
    tm = TILE_M
    tk = _pick_tk(n_pad)
    g_pad = _round_up(max(num_graphs, 1), 8)

    # Host-side block-sparsity schedule (scalar-prefetched into SMEM).
    batch_np = np.asarray(batch)
    edge_np = np.asarray(edge_index)
    ks_np, kc_np, max_kc = _tile_schedule(batch_np, edge_np, n, n_pad, tm, tk,
                                          num_graphs)
    kstart = jnp.asarray(ks_np, dtype=jnp.int32)
    kcount = jnp.asarray(kc_np, dtype=jnp.int32)

    # X / H1 VMEM-resident when they fit; else streamed with the skip map.
    x_resident = (n_pad * FEAT_PAD * 2) <= X_RESIDENT_MAX_BYTES

    # Dense normalized adjacency, built directly into the padded bf16 buffer.
    a_pad = build_normalized_adj_padded(edge_index, edge_weight, n, n_pad)

    # Node features, lane-dense padded, bf16 (MXU input).
    x_pad = _pad2d(x, n_pad, FEAT_PAD, jnp.bfloat16)

    # Weights/biases stay f32: the epilogue matmuls run in full f32.
    w1 = _pad2d(params["w1"], FEAT_PAD, FEAT_PAD, jnp.float32)
    b1 = _pad2d(params["b1"], 1, FEAT_PAD, jnp.float32)
    w2 = _pad2d(params["w2"], FEAT_PAD, FEAT_PAD, jnp.float32)
    b2 = _pad2d(params["b2"], 1, FEAT_PAD, jnp.float32)
    wl1 = _pad2d(params["wl1"], FEAT_PAD, FEAT_PAD, jnp.float32)
    bl1 = _pad2d(params["bl1"], 1, FEAT_PAD, jnp.float32)
    wl2 = _pad2d(params["wl2"], FEAT_PAD, FEAT_PAD, jnp.float32)
    bl2 = _pad2d(params["bl2"], 1, FEAT_PAD, jnp.float32)

    # Mean-pool as exact one-hot (f32) sum-pool + f32 1/count scaling.
    onehot = (batch[None, :] == jnp.arange(num_graphs)[:, None]).astype(jnp.float32)
    counts = jnp.maximum(onehot.sum(axis=1, keepdims=True), 1.0)       # [G, 1]
    p_pad = _pad2d(onehot, g_pad, n_pad, jnp.float32)
    inv = _pad2d(jnp.broadcast_to(1.0 / counts, (num_graphs, FEAT_PAD)),
                 g_pad, FEAT_PAD, jnp.float32)

    # conv1: relu((A @ X) @ W1 + b1)  -- reordered, cheap contraction width.
    h1 = gcn_conv(a_pad, x_pad, w1, b1, kstart, kcount, max_kc,
                  tm=tm, tk=tk, x_resident=x_resident)
    # conv2 + fused pooling partials: P_tile @ relu((A @ H1) @ W2 + b2).
    parts = gcn_conv(a_pad, h1, w2, b2, kstart, kcount, max_kc,
                     tm=tm, tk=tk, x_resident=x_resident, p=p_pad)
    # mean scale + (eval-mode dropout = identity) + lin1 + relu + lin2.
    out = gcn_head(parts, inv, wl1, bl1, wl2, bl2)

    return out[:num_graphs, :out_feats]


def gcn_reference(x, edge_index, edge_weight, batch, num_graphs, params):
    n = x.shape[0]
    src, dst = edge_index[0], edge_index[1]
    loop = jnp.arange(n, dtype=src.dtype)
    src = jnp.concatenate([src, loop])
    dst = jnp.concatenate([dst, loop])
    ew = jnp.concatenate([edge_weight, jnp.ones((n,), edge_weight.dtype)])
    deg = jnp.zeros((n,), jnp.float32).at[dst].add(ew)
    dinv = jnp.where(deg > 0, 1.0 / jnp.sqrt(deg), 0.0)
    a_hat = jnp.zeros((n, n), jnp.float32).at[dst, src].add(dinv[src] * ew * dinv[dst])

    h = jnp.maximum(a_hat @ x @ params["w1"] + params["b1"], 0.0)
    h = jnp.maximum(a_hat @ h @ params["w2"] + params["b2"], 0.0)
    onehot = (batch[None, :] == jnp.arange(num_graphs)[:, None]).astype(jnp.float32)
    counts = jnp.maximum(onehot.sum(axis=1, keepdims=True), 1.0)
    pooled = (onehot @ h) / counts
    z = jnp.maximum(pooled @ params["wl1"] + params["bl1"], 0.0)
    return z @ params["wl2"] + params["bl2"]


def init_params(key, in_feats, hidden_size, out_feats):
    ks = jax.random.split(key, 8)
    scale = 0.1
    # GCNConv weights stored [in, out]; Linear weights pre-transposed to [in, out].
    return {
        "w1": scale * jax.random.normal(ks[0], (in_feats, hidden_size), jnp.float32),
        "b1": scale * jax.random.normal(ks[1], (1, hidden_size), jnp.float32),
        "w2": scale * jax.random.normal(ks[2], (hidden_size, hidden_size), jnp.float32),
        "b2": scale * jax.random.normal(ks[3], (1, hidden_size), jnp.float32),
        "wl1": scale * jax.random.normal(ks[4], (hidden_size, in_feats), jnp.float32),
        "bl1": scale * jax.random.normal(ks[5], (1, in_feats), jnp.float32),
        "wl2": scale * jax.random.normal(ks[6], (in_feats, out_feats), jnp.float32),
        "bl2": scale * jax.random.normal(ks[7], (1, out_feats), jnp.float32),
    }


if __name__ == "__main__":
    key = jax.random.PRNGKey(0)
    in_feats, hidden_size, out_feats = 4, 32, 3
    nodes_per_graph, num_graphs = 8, 2
    n_nodes = nodes_per_graph * num_graphs

    k_x, k_w, k_p = jax.random.split(key, 3)

    # Node features.
    x = jax.random.normal(k_x, (n_nodes, in_feats), jnp.float32)

    # Edges: directed ring inside each graph (no cross-graph edges).
    src_list, dst_list = [], []
    for g in range(num_graphs):
        base = g * nodes_per_graph
        for i in range(nodes_per_graph):
            src_list.append(base + i)
            dst_list.append(base + (i + 1) % nodes_per_graph)
    edge_index = jnp.array([src_list, dst_list], dtype=jnp.int32)
    edge_weight = jax.random.uniform(k_w, (edge_index.shape[1],), jnp.float32,
                                     minval=0.5, maxval=1.5)

    # Node -> graph assignment (data.batch).
    batch = jnp.repeat(jnp.arange(num_graphs, dtype=jnp.int32), nodes_per_graph)

    params = init_params(k_p, in_feats, hidden_size, out_feats)

    out = gcn_forward(x, edge_index, edge_weight, batch, num_graphs, params)
    out = jax.block_until_ready(out)
    assert out.shape == (num_graphs, out_feats)

    ref = gcn_reference(x, edge_index, edge_weight, batch, num_graphs, params)
    assert jnp.allclose(out, ref, atol=2e-2, rtol=2e-2), (out, ref)

    print("KERNEL_OK")
</pallas_src>

<mosaic_0001>
module attributes {stable_mosaic.version = 11 : i64} {
  func.func @_conv_kernel(%arg0: i32, %arg1: i32, %arg2: memref<1xi32, #tpu.memory_space<smem>>, %arg3: memref<1xi32, #tpu.memory_space<smem>>, %arg4: memref<256x256xbf16, #tpu.memory_space<vmem>>, %arg5: memref<256x128xbf16, #tpu.memory_space<vmem>>, %arg6: memref<128x128xf32, #tpu.memory_space<vmem>>, %arg7: memref<1x128xf32, #tpu.memory_space<vmem>>, %arg8: memref<256x128xbf16, #tpu.memory_space<vmem>>, %arg9: memref<256x128xf32, #tpu.memory_space<vmem>>) attributes {dimension_semantics = [#tpu.dimension_semantics<parallel>, #tpu.dimension_semantics<arbitrary>], iteration_bounds = array<i64: 1, 1>, scalar_prefetch = 2 : i64, scratch_operands = 1 : i64, tpu.core_type = #tpu.core_type<tc>, window_params = [{transform_indices = @transform_0, window_bounds = array<i64: 256, 256>}, {pipeline_mode = #tpu.pipeline_mode<synchronous>, transform_indices = @transform_1, window_bounds = array<i64: 256, 128>}, {pipeline_mode = #tpu.pipeline_mode<synchronous>, transform_indices = @transform_2, window_bounds = array<i64: 128, 128>}, {pipeline_mode = #tpu.pipeline_mode<synchronous>, transform_indices = @transform_3, window_bounds = array<i64: 1, 128>}, {transform_indices = @transform_4, window_bounds = array<i64: 256, 128>}]} {
    %c0_i32 = arith.constant 0 : i32
    %0 = arith.cmpi eq, %arg1, %c0_i32 : i32
    %1 = arith.extui %0 : i1 to i32
    %c0_i32_0 = arith.constant 0 : i32
    %2 = arith.cmpi ne, %1, %c0_i32_0 : i32
    scf.if %2 {
      %cst = arith.constant 0.000000e+00 : f32
      %11 = vector.broadcast %cst : f32 to vector<256x128xf32>
      %c0 = arith.constant 0 : index
      %c0_4 = arith.constant 0 : index
      %12 = vector.load %arg9[%c0, %c0_4] : memref<256x128xf32, #tpu.memory_space<vmem>>, vector<256x128xf32>
      tpu.vector_store %arg9[%c0, %c0_4], %11 {strides = array<i32>} : memref<256x128xf32, #tpu.memory_space<vmem>>, vector<256x128xf32>,
    } else {
    }
    %3 = arith.index_cast %arg0 : i32 to index
    %4 = memref.load %arg3[%3] : memref<1xi32, #tpu.memory_space<smem>>
    %5 = arith.cmpi slt, %arg1, %4 : i32
    %6 = arith.extui %5 : i1 to i32
    %c0_i32_1 = arith.constant 0 : i32
    %7 = arith.cmpi ne, %6, %c0_i32_1 : i32
    scf.if %7 {
      %11 = arith.index_cast %arg0 : i32 to index
      %12 = memref.load %arg2[%11] : memref<1xi32, #tpu.memory_space<smem>>
      %13 = arith.index_cast %arg0 : i32 to index
      %14 = memref.load %arg3[%13] : memref<1xi32, #tpu.memory_space<smem>>
      %c1_i32 = arith.constant 1 : i32
      %15 = arith.subi %14, %c1_i32 : i32
      %16 = arith.minsi %arg1, %15 : i32
      %17 = arith.addi %12, %16 : i32
      %c256_i32 = arith.constant 256 : i32
      %18 = arith.muli %17, %c256_i32 : i32
      %19 = tpu.assume_multiple %18, 256 : i32
      %20 = arith.index_cast %19 : i32 to index
      %c0 = arith.constant 0 : index
      %21 = vector.load %arg5[%20, %c0] : memref<256x128xbf16, #tpu.memory_space<vmem>>, vector<256x128xbf16>
      %c0_4 = arith.constant 0 : index
      %c0_5 = arith.constant 0 : index
      %22 = vector.load %arg9[%c0_4, %c0_5] : memref<256x128xf32, #tpu.memory_space<vmem>>, vector<256x128xf32>
      %c0_6 = arith.constant 0 : index
      %c0_7 = arith.constant 0 : index
      %23 = vector.load %arg4[%c0_6, %c0_7] : memref<256x256xbf16, #tpu.memory_space<vmem>>, vector<256x256xbf16>
      %cst = arith.constant dense<0.000000e+00> : vector<256x128xf32>
      %24 = tpu.matmul %23, %21, %cst {dimension_numbers = #tpu.dot_dimension_numbers<[1], [0], [0], [1], [0, 0, 1, 1], [], []>} : vector<256x256xbf16>, vector<256x128xbf16>, vector<256x128xf32> -> vector<256x128xf32>
      %25 = arith.addf %22, %24 : vector<256x128xf32>
      %c0_8 = arith.constant 0 : index
      %c0_9 = arith.constant 0 : index
      %26 = vector.load %arg9[%c0_8, %c0_9] : memref<256x128xf32, #tpu.memory_space<vmem>>, vector<256x128xf32>
      tpu.vector_store %arg9[%c0_8, %c0_9], %25 {strides = array<i32>} : memref<256x128xf32, #tpu.memory_space<vmem>>, vector<256x128xf32>,
    } else {
    }
    %c0_i32_2 = arith.constant 0 : i32
    %8 = arith.cmpi eq, %arg1, %c0_i32_2 : i32
    %9 = arith.extui %8 : i1 to i32
    %c0_i32_3 = arith.constant 0 : i32
    %10 = arith.cmpi ne, %9, %c0_i32_3 : i32
    scf.if %10 {
      %c0 = arith.constant 0 : index
      %c0_4 = arith.constant 0 : index
      %11 = vector.load %arg9[%c0, %c0_4] : memref<256x128xf32, #tpu.memory_space<vmem>>, vector<256x128xf32>
      %c0_5 = arith.constant 0 : index
      %c0_6 = arith.constant 0 : index
      %12 = vector.load %arg6[%c0_5, %c0_6] : memref<128x128xf32, #tpu.memory_space<vmem>>, vector<128x128xf32>
      %cst = arith.constant dense<0.000000e+00> : vector<256x128xf32>
      %13 = tpu.matmul %11, %12, %cst {dimension_numbers = #tpu.dot_dimension_numbers<[1], [0], [0], [1], [0, 0, 1, 1], [], []>} : vector<256x128xf32>, vector<128x128xf32>, vector<256x128xf32> -> vector<256x128xf32>
      %c0_7 = arith.constant 0 : index
      %c0_8 = arith.constant 0 : index
      %14 = vector.load %arg7[%c0_7, %c0_8] : memref<1x128xf32, #tpu.memory_space<vmem>>, vector<1x128xf32>
      %15 = vector.broadcast %14 : vector<1x128xf32> to vector<256x128xf32>
      %16 = arith.addf %13, %15 : vector<256x128xf32>
      %cst_9 = arith.constant 0.000000e+00 : f32
      %17 = vector.broadcast %cst_9 : f32 to vector<256x128xf32>
      %18 = arith.maximumf %16, %17 : vector<256x128xf32>
      %19 = arith.truncf %18 : vector<256x128xf32> to vector<256x128xbf16>
      %c0_10 = arith.constant 0 : index
      %c0_11 = arith.constant 0 : index
      %20 = vector.load %arg8[%c0_10, %c0_11] : memref<256x128xbf16, #tpu.memory_space<vmem>>, vector<256x128xbf16>
      tpu.vector_store %arg8[%c0_10, %c0_11], %19 {strides = array<i32>} : memref<256x128xbf16, #tpu.memory_space<vmem>>, vector<256x128xbf16>,
    } else {
    }
    return
  }
  func.func @transform_0(%arg0: i32, %arg1: i32, %arg2: memref<1xi32, #tpu.memory_space<smem>>, %arg3: memref<1xi32, #tpu.memory_space<smem>>) -> (i32, i32) {
    %0 = arith.index_cast %arg0 : i32 to index
    %1 = memref.load %arg2[%0] : memref<1xi32, #tpu.memory_space<smem>>
    %2 = arith.index_cast %arg0 : i32 to index
    %3 = memref.load %arg3[%2] : memref<1xi32, #tpu.memory_space<smem>>
    %c1_i32 = arith.constant 1 : i32
    %4 = arith.subi %3, %c1_i32 : i32
    %5 = arith.minsi %arg1, %4 : i32
    %6 = arith.addi %1, %5 : i32
    %c0_i32 = arith.constant 0 : i32
    return %arg0, %6 : i32, i32
  }
  func.func @transform_1(%arg0: i32, %arg1: i32, %arg2: memref<1xi32, #tpu.memory_space<smem>>, %arg3: memref<1xi32, #tpu.memory_space<smem>>) -> (i32, i32) {
    %c0_i32 = arith.constant 0 : i32
    %c0_i32_0 = arith.constant 0 : i32
    %c0_i32_1 = arith.constant 0 : i32
    return %c0_i32, %c0_i32_0 : i32, i32
  }
  func.func @transform_2(%arg0: i32, %arg1: i32, %arg2: memref<1xi32, #tpu.memory_space<smem>>, %arg3: memref<1xi32, #tpu.memory_space<smem>>) -> (i32, i32) {
    %c0_i32 = arith.constant 0 : i32
    %c0_i32_0 = arith.constant 0 : i32
    %c0_i32_1 = arith.constant 0 : i32
    return %c0_i32, %c0_i32_0 : i32, i32
  }
  func.func @transform_3(%arg0: i32, %arg1: i32, %arg2: memref<1xi32, #tpu.memory_space<smem>>, %arg3: memref<1xi32, #tpu.memory_space<smem>>) -> (i32, i32) {
    %c0_i32 = arith.constant 0 : i32
    %c0_i32_0 = arith.constant 0 : i32
    %c0_i32_1 = arith.constant 0 : i32
    return %c0_i32, %c0_i32_0 : i32, i32
  }
  func.func @transform_4(%arg0: i32, %arg1: i32, %arg2: memref<1xi32, #tpu.memory_space<smem>>, %arg3: memref<1xi32, #tpu.memory_space<smem>>) -> (i32, i32) {
    %c0_i32 = arith.constant 0 : i32
    %c0_i32_0 = arith.constant 0 : i32
    return %arg0, %c0_i32 : i32, i32
  }
}

</mosaic_0001>

<llo_original>
// kernel: tpu_custom_call.1
$region0: #{tpu_custom_call.1}
  #allocation0 [shape = 'u32[]', space=smem, size = 0x4, offset = 0x4, fixed_abs, tag = 'smem constant byte address 0x4 - core index']
  #allocation1 [shape = 'u32[72,128]{1,0:T(1,128)}', space=vmem, size = 0x9000, scoped, tag = 'internal scratch']
  #allocation2 [shape = 'f32[256,128]{1,0:T(8,128)}', space=vmem, size = 0x20000, scoped, tag = 'scratch operand']
  #allocation3 [shape = 's32[1]{0}', space=sflag, size = 0x4, scoped, tag = 'scoped memory for tpu_custom_call.1']
  #allocation4 [shape = 's32[1]{0:T(128)S(6)}', space=smem, size = 0x200, scoped, tag = 'prefetched SMEM operand 0']
  #allocation5 [shape = 's32[1]{0:T(128)S(6)}', space=smem, size = 0x200, scoped, tag = 'prefetched SMEM operand 1']
  %s0 = inlined_call_operand.<no memory space> [shape: s32[1], index: 0, kind: input, shape index: {}]
  %s1 = inlined_call_operand.<no memory space> [shape: s32[1], index: 1, kind: input, shape index: {}]
  %s2 = inlined_call_operand.hbm [shape: bf16[256,256], index: 2, kind: input, shape index: {}]
  %s3 = inlined_call_operand.hbm [shape: bf16[256,128], index: 3, kind: input, shape index: {}]
  %s4 = inlined_call_operand.hbm [shape: f32[128,128], index: 4, kind: input, shape index: {}]
  %s5 = inlined_call_operand.vmem [shape: f32[1,128], index: 5, kind: input, shape index: {}]
  %s6 = inlined_call_operand.hbm [shape: bf16[256,128], index: 6, kind: output, shape index: {}]
  %s7 = sld [smem:[#allocation0]]
  $region50: #{tpu_custom_call.1} parent=0
    _
  %s9 = ssub.s32 1, %s7
  %s10 = scalar_select 0, %s9, %s7
  %11 = sst [smem:[#allocation4]] %s0
  %12 = sst [smem:[#allocation5]] %s1
  $region1: #{tpu_custom_call.1} parent=0
    #allocation6 [shape = 'u8[131072]{0}', space=vmem, size = 0x20000, scoped, tag = 'input window, operand 2, single buffered']
    #allocation7 [shape = 's32[1]{0}', space=sflag, size = 0x4, scoped, tag = 'scoped memory for tpu_custom_call.1']
    #allocation8 [shape = 's32[1]{0}', space=sflag, size = 0x4, scoped, tag = 'scoped memory for tpu_custom_call.1']
    #allocation9 [shape = 'u8[65536]{0}', space=vmem, size = 0x10000, scoped, tag = 'input window, operand 3, single buffered']
    #allocation10 [shape = 's32[1]{0}', space=sflag, size = 0x4, scoped, tag = 'scoped memory for tpu_custom_call.1']
    #allocation11 [shape = 'u8[65536]{0}', space=vmem, size = 0x10000, scoped, tag = 'input window, operand 4, single buffered']
    #allocation12 [shape = 'u8[65536]{0}', space=vmem, size = 0x10000, scoped, tag = 'output window, operand 0, single buffered']
    %13 = vsyncpa [#allocation7], 0
    %14 = vsyncpa [#allocation10], 0
    %15 = vsyncpa [#allocation8], 0
    // Predicated region
    $region2: #{tpu_custom_call.1} parent=1 // pred_check
      _
    $region3: #{tpu_custom_call.1} parent=1 // pred_check_branch
      %17 = sbr.rel (0) target = $region5
    $region4: #{tpu_custom_call.1} parent=1 // pred_region
      %s18 = sld [smem:[#allocation4]]
      %s19 = sld [smem:[#allocation5]]
      %s20 = ssub.s32 %s19, 1
      %p21 = scmp.lt.s32.totalorder 0, %s20
      %s22 = scalar_select %p21, 0, %s20
      %s23 = sadd.s32 %s18, %s22
      %s24 = smul.u32 2, %s23
      %26 = vsyncadd [#allocation7], 0
      %s27 = smul.addr %s24, 4
      %s28 = scalar_lea.hbm %s2, %s27
      %s29 = sshll.u32 %s28, 4
      %s30 = int_to_ptr.hbm [resolvable:$true] %s29
      %s31 = sshll.u32 [#allocation6], 4
      %s32 = int_to_ptr.vmem [resolvable:$true] %s31
      %37 = dma.hbm_to_vmem [thread:$0]  %s30, 4096, %s32, [#allocation7], 128, 128, 8
    $region5: #{tpu_custom_call.1} parent=1 // pred_fallthru
      _
    // Predicated region
    $region6: #{tpu_custom_call.1} parent=1 // pred_check
      _
    $region7: #{tpu_custom_call.1} parent=1 // pred_check_branch
      %39 = sbr.rel (0) target = $region9
    $region8: #{tpu_custom_call.1} parent=1 // pred_region
      %41 = vsyncadd [#allocation10], 0
      %s42 = sshll.u32 %s3, 4
      %s43 = int_to_ptr.hbm [resolvable:$true] %s42
      %s44 = sshll.u32 [#allocation9], 4
      %s45 = int_to_ptr.vmem [resolvable:$true] %s44
      %50 = dma.hbm_to_vmem [thread:$0]  %s43, 2048, %s45, [#allocation10], 64, 64, 4
    $region9: #{tpu_custom_call.1} parent=1 // pred_fallthru
      _
    // Predicated region
    $region10: #{tpu_custom_call.1} parent=1 // pred_check
      _
    $region11: #{tpu_custom_call.1} parent=1 // pred_check_branch
      %52 = sbr.rel (0) target = $region13
    $region12: #{tpu_custom_call.1} parent=1 // pred_region
      %54 = vsyncadd [#allocation10], 0
      %s55 = sshll.u32 %s4, 4
      %s56 = int_to_ptr.hbm [resolvable:$true] %s55
      %s57 = sshll.u32 [#allocation11], 4
      %s58 = int_to_ptr.vmem [resolvable:$true] %s57
      %63 = dma.hbm_to_vmem [thread:$0]  %s56, 2048, %s58, [#allocation10], 128, 128, 8
    $region13: #{tpu_custom_call.1} parent=1 // pred_fallthru
      _
    // Predicated region
    $region14: #{tpu_custom_call.1} parent=1 // pred_check
      _
    $region15: #{tpu_custom_call.1} parent=1 // pred_check_branch
      %65 = sbr.rel (0) target = $region17
    $region16: #{tpu_custom_call.1} parent=1 // pred_region
      _
    $region17: #{tpu_custom_call.1} parent=1 // pred_fallthru
      _
    // Predicated region
    $region18: #{tpu_custom_call.1} parent=1 // pred_check
      _
    $region19: #{tpu_custom_call.1} parent=1 // pred_check_branch
      %67 = sbr.rel (0) target = $region21
    $region20: #{tpu_custom_call.1} parent=1 // pred_region
      %69 = dma.done [#allocation7], 4096
    $region21: #{tpu_custom_call.1} parent=1 // pred_fallthru
      _
    // Predicated region
    $region22: #{tpu_custom_call.1} parent=1 // pred_check
      _
    $region23: #{tpu_custom_call.1} parent=1 // pred_check_branch
      %71 = sbr.rel (0) target = $region25
    $region24: #{tpu_custom_call.1} parent=1 // pred_region
      %73 = dma.done [#allocation10], 2048
    $region25: #{tpu_custom_call.1} parent=1 // pred_fallthru
      _
    // Predicated region
    $region26: #{tpu_custom_call.1} parent=1 // pred_check
      _
    $region27: #{tpu_custom_call.1} parent=1 // pred_check_branch
      %75 = sbr.rel (0) target = $region29
    $region28: #{tpu_custom_call.1} parent=1 // pred_region
      %77 = dma.done [#allocation10], 2048
    $region29: #{tpu_custom_call.1} parent=1 // pred_fallthru
      _
    %s78 = sld [smem:[#allocation4]]
    %s79 = sld [smem:[#allocation5]]
    %s80 = ssub.s32 %s79, 1
    %p81 = scmp.lt.s32.totalorder 0, %s80
    %s82 = scalar_select %p81, 0, %s80
    %s83 = sadd.s32 %s78, %s82
    %s84 = smul.u32 2, %s83
    %p85 = scmp.eq.s32.totalorder 0, 0
    // Predicated region
    $region30: #{tpu_custom_call.1} parent=1 // pred_check
      %p86 = pneg %p85
    $region31: #{tpu_custom_call.1} parent=1 // pred_check_branch
      %88 = sbr.rel (%p86) target = $region33
    $region32: #{tpu_custom_call.1} parent=1 // pred_region
      %89 = vst [vmem:[#allocation2] sm:$0xff] 0.0
      %90 = vst [vmem:[#allocation2 + $0x8] sm:$0xff] 0.0
      %91 = vst [vmem:[#allocation2 + $0x10] sm:$0xff] 0.0
      %92 = vst [vmem:[#allocation2 + $0x18] sm:$0xff] 0.0
      %93 = vst [vmem:[#allocation2 + $0x20] sm:$0xff] 0.0
      %94 = vst [vmem:[#allocation2 + $0x28] sm:$0xff] 0.0
      %95 = vst [vmem:[#allocation2 + $0x30] sm:$0xff] 0.0
      %96 = vst [vmem:[#allocation2 + $0x38] sm:$0xff] 0.0
      %97 = vst [vmem:[#allocation2 + $0x40] sm:$0xff] 0.0
      %98 = vst [vmem:[#allocation2 + $0x48] sm:$0xff] 0.0
      %99 = vst [vmem:[#allocation2 + $0x50] sm:$0xff] 0.0
      %100 = vst [vmem:[#allocation2 + $0x58] sm:$0xff] 0.0
      %101 = vst [vmem:[#allocation2 + $0x60] sm:$0xff] 0.0
      %102 = vst [vmem:[#allocation2 + $0x68] sm:$0xff] 0.0
      %103 = vst [vmem:[#allocation2 + $0x70] sm:$0xff] 0.0
      %104 = vst [vmem:[#allocation2 + $0x78] sm:$0xff] 0.0
      %105 = vst [vmem:[#allocation2 + $0x80] sm:$0xff] 0.0
      %106 = vst [vmem:[#allocation2 + $0x88] sm:$0xff] 0.0
      %107 = vst [vmem:[#allocation2 + $0x90] sm:$0xff] 0.0
      %108 = vst [vmem:[#allocation2 + $0x98] sm:$0xff] 0.0
      %109 = vst [vmem:[#allocation2 + $0xa0] sm:$0xff] 0.0
      %110 = vst [vmem:[#allocation2 + $0xa8] sm:$0xff] 0.0
      %111 = vst [vmem:[#allocation2 + $0xb0] sm:$0xff] 0.0
      %112 = vst [vmem:[#allocation2 + $0xb8] sm:$0xff] 0.0
      %113 = vst [vmem:[#allocation2 + $0xc0] sm:$0xff] 0.0
      %114 = vst [vmem:[#allocation2 + $0xc8] sm:$0xff] 0.0
      %115 = vst [vmem:[#allocation2 + $0xd0] sm:$0xff] 0.0
      %116 = vst [vmem:[#allocation2 + $0xd8] sm:$0xff] 0.0
      %117 = vst [vmem:[#allocation2 + $0xe0] sm:$0xff] 0.0
      %118 = vst [vmem:[#allocation2 + $0xe8] sm:$0xff] 0.0
      %119 = vst [vmem:[#allocation2 + $0xf0] sm:$0xff] 0.0
      %120 = vst [vmem:[#allocation2 + $0xf8] sm:$0xff] 0.0
    $region33: #{tpu_custom_call.1} parent=1 // pred_fallthru
      _
    %s121 = sld [smem:[#allocation5]]
    %p122 = scmp.lt.s32.totalorder 0, %s121
    // Predicated region
    $region34: #{tpu_custom_call.1} parent=1 // pred_check
      %p123 = pneg %p122
    $region35: #{tpu_custom_call.1} parent=1 // pred_check_branch
      %125 = sbr.rel (%p123) target = $region37
    $region36: #{tpu_custom_call.1} parent=1 // pred_region
      %s126 = sld [smem:[#allocation4]]
      %s127 = sld [smem:[#allocation5]]
      %s128 = ssub.s32 %s127, 1
      %p129 = scmp.lt.s32.totalorder 0, %s128
      %s130 = scalar_select %p129, 0, %s128
      %s131 = sadd.s32 %s126, %s130
      %s132 = smul.u32 %s131, 256
      %s133 = sshra.s32 %s132, 3
      %s134 = sand.u32 %s132, 7
      %s135 = smul.addr %s133, 4
      %s136 = scalar_lea.vmem [#allocation9], %s135
      %v137 = vld [vmem:[%s136] sm:$0xf]
      %v138 = vld [vmem:[%s136 + $0x4] sm:$0xf]
      %v139 = vld [vmem:[%s136 + $0x8] sm:$0xf]
      %v140 = vld [vmem:[%s136 + $0xc] sm:$0xf]
      %v141 = vld [vmem:[%s136 + $0x10] sm:$0xf]
      %v142 = vld [vmem:[%s136 + $0x14] sm:$0xf]
      %v143 = vld [vmem:[%s136 + $0x18] sm:$0xf]
      %v144 = vld [vmem:[%s136 + $0x1c] sm:$0xf]
      %v145 = vld [vmem:[%s136 + $0x20] sm:$0xf]
      %v146 = vld [vmem:[%s136 + $0x24] sm:$0xf]
      %v147 = vld [vmem:[%s136 + $0x28] sm:$0xf]
      %v148 = vld [vmem:[%s136 + $0x2c] sm:$0xf]
      %v149 = vld [vmem:[%s136 + $0x30] sm:$0xf]
      %v150 = vld [vmem:[%s136 + $0x34] sm:$0xf]
      %v151 = vld [vmem:[%s136 + $0x38] sm:$0xf]
      %v152 = vld [vmem:[%s136 + $0x3c] sm:$0xf]
      %v153 = vld [vmem:[%s136 + $0x40] sm:$0xf]
      %v154 = vld [vmem:[%s136 + $0x44] sm:$0xf]
      %v155 = vld [vmem:[%s136 + $0x48] sm:$0xf]
      %v156 = vld [vmem:[%s136 + $0x4c] sm:$0xf]
      %v157 = vld [vmem:[%s136 + $0x50] sm:$0xf]
      %v158 = vld [vmem:[%s136 + $0x54] sm:$0xf]
      %v159 = vld [vmem:[%s136 + $0x58] sm:$0xf]
      %v160 = vld [vmem:[%s136 + $0x5c] sm:$0xf]
      %v161 = vld [vmem:[%s136 + $0x60] sm:$0xf]
      %v162 = vld [vmem:[%s136 + $0x64] sm:$0xf]
      %v163 = vld [vmem:[%s136 + $0x68] sm:$0xf]
      %v164 = vld [vmem:[%s136 + $0x6c] sm:$0xf]
      %v165 = vld [vmem:[%s136 + $0x70] sm:$0xf]
      %v166 = vld [vmem:[%s136 + $0x74] sm:$0xf]
      %v167 = vld [vmem:[%s136 + $0x78] sm:$0xf]
      %v168 = vld [vmem:[%s136 + $0x7c] sm:$0xf]
      %v169 = vld [vmem:[#allocation2] sm:$0xff]
      %v170 = vld [vmem:[#allocation2 + $0x8] sm:$0xff]
      %v171 = vld [vmem:[#allocation2 + $0x10] sm:$0xff]
      %v172 = vld [vmem:[#allocation2 + $0x18] sm:$0xff]
      %v173 = vld [vmem:[#allocation2 + $0x20] sm:$0xff]
      %v174 = vld [vmem:[#allocation2 + $0x28] sm:$0xff]
      %v175 = vld [vmem:[#allocation2 + $0x30] sm:$0xff]
      %v176 = vld [vmem:[#allocation2 + $0x38] sm:$0xff]
      %v177 = vld [vmem:[#allocation2 + $0x40] sm:$0xff]
      %v178 = vld [vmem:[#allocation2 + $0x48] sm:$0xff]
      %v179 = vld [vmem:[#allocation2 + $0x50] sm:$0xff]
      %v180 = vld [vmem:[#allocation2 + $0x58] sm:$0xff]
      %v181 = vld [vmem:[#allocation2 + $0x60] sm:$0xff]
      %v182 = vld [vmem:[#allocation2 + $0x68] sm:$0xff]
      %v183 = vld [vmem:[#allocation2 + $0x70] sm:$0xff]
      %v184 = vld [vmem:[#allocation2 + $0x78] sm:$0xff]
      %v185 = vld [vmem:[#allocation2 + $0x80] sm:$0xff]
      %v186 = vld [vmem:[#allocation2 + $0x88] sm:$0xff]
      %v187 = vld [vmem:[#allocation2 + $0x90] sm:$0xff]
      %v188 = vld [vmem:[#allocation2 + $0x98] sm:$0xff]
      %v189 = vld [vmem:[#allocation2 + $0xa0] sm:$0xff]
      %v190 = vld [vmem:[#allocation2 + $0xa8] sm:$0xff]
      %v191 = vld [vmem:[#allocation2 + $0xb0] sm:$0xff]
      %v192 = vld [vmem:[#allocation2 + $0xb8] sm:$0xff]
      %v193 = vld [vmem:[#allocation2 + $0xc0] sm:$0xff]
      %v194 = vld [vmem:[#allocation2 + $0xc8] sm:$0xff]
      %v195 = vld [vmem:[#allocation2 + $0xd0] sm:$0xff]
      %v196 = vld [vmem:[#allocation2 + $0xd8] sm:$0xff]
      %v197 = vld [vmem:[#allocation2 + $0xe0] sm:$0xff]
      %v198 = vld [vmem:[#allocation2 + $0xe8] sm:$0xff]
      %v199 = vld [vmem:[#allocation2 + $0xf0] sm:$0xff]
      %v200 = vld [vmem:[#allocation2 + $0xf8] sm:$0xff]
      %v201 = vld [vmem:[#allocation6] sm:$0xff]
      %v202 = vld [vmem:[#allocation6 + $0x8] sm:$0xff]
      %v203 = vld [vmem:[#allocation6 + $0x10] sm:$0xff]
      %v204 = vld [vmem:[#allocation6 + $0x18] sm:$0xff]
      %v205 = vld [vmem:[#allocation6 + $0x20] sm:$0xff]
      %v206 = vld [vmem:[#allocation6 + $0x28] sm:$0xff]
      %v207 = vld [vmem:[#allocation6 + $0x30] sm:$0xff]
      %v208 = vld [vmem:[#allocation6 + $0x38] sm:$0xff]
      %v209 = vld [vmem:[#allocation6 + $0x40] sm:$0xff]
      %v210 = vld [vmem:[#allocation6 + $0x48] sm:$0xff]
      %v211 = vld [vmem:[#allocation6 + $0x50] sm:$0xff]
      %v212 = vld [vmem:[#allocation6 + $0x58] sm:$0xff]
      %v213 = vld [vmem:[#allocation6 + $0x60] sm:$0xff]
      %v214 = vld [vmem:[#allocation6 + $0x68] sm:$0xff]
      %v215 = vld [vmem:[#allocation6 + $0x70] sm:$0xff]
      %v216 = vld [vmem:[#allocation6 + $0x78] sm:$0xff]
      %v217 = vld [vmem:[#allocation6 + $0x80] sm:$0xff]
      %v218 = vld [vmem:[#allocation6 + $0x88] sm:$0xff]
      %v219 = vld [vmem:[#allocation6 + $0x90] sm:$0xff]
      %v220 = vld [vmem:[#allocation6 + $0x98] sm:$0xff]
      %v221 = vld [vmem:[#allocation6 + $0xa0] sm:$0xff]
      %v222 = vld [vmem:[#allocation6 + $0xa8] sm:$0xff]
      %v223 = vld [vmem:[#allocation6 + $0xb0] sm:$0xff]
      %v224 = vld [vmem:[#allocation6 + $0xb8] sm:$0xff]
      %v225 = vld [vmem:[#allocation6 + $0xc0] sm:$0xff]
      %v226 = vld [vmem:[#allocation6 + $0xc8] sm:$0xff]
      %v227 = vld [vmem:[#allocation6 + $0xd0] sm:$0xff]
      %v228 = vld [vmem:[#allocation6 + $0xd8] sm:$0xff]
      %v229 = vld [vmem:[#allocation6 + $0xe0] sm:$0xff]
      %v230 = vld [vmem:[#allocation6 + $0xe8] sm:$0xff]
      %v231 = vld [vmem:[#allocation6 + $0xf0] sm:$0xff]
      %v232 = vld [vmem:[#allocation6 + $0xf8] sm:$0xff]
      %v265 = vunpack.c.l.b16 %v201
      %v266 = vunpack.c.h.b16 %v201
      %v267 = vunpack.c.l.b16 %v202
      %v268 = vunpack.c.h.b16 %v202
      %v269 = vunpack.c.l.b16 %v203
      %v270 = vunpack.c.h.b16 %v203
      %v271 = vunpack.c.l.b16 %v204
      %v272 = vunpack.c.h.b16 %v204
      %v273 = vunpack.c.l.b16 %v205
      %v274 = vunpack.c.h.b16 %v205
      %v275 = vunpack.c.l.b16 %v206
      %v276 = vunpack.c.h.b16 %v206
      %v277 = vunpack.c.l.b16 %v207
      %v278 = vunpack.c.h.b16 %v207
      %v279 = vunpack.c.l.b16 %v208
      %v280 = vunpack.c.h.b16 %v208
      %v281 = vunpack.c.l.b16 %v209
      %v282 = vunpack.c.h.b16 %v209
      %v283 = vunpack.c.l.b16 %v210
      %v284 = vunpack.c.h.b16 %v210
      %v285 = vunpack.c.l.b16 %v211
      %v286 = vunpack.c.h.b16 %v211
      %v287 = vunpack.c.l.b16 %v212
      %v288 = vunpack.c.h.b16 %v212
      %v289 = vunpack.c.l.b16 %v213
      %v290 = vunpack.c.h.b16 %v213
      %v291 = vunpack.c.l.b16 %v214
      %v292 = vunpack.c.h.b16 %v214
      %v293 = vunpack.c.l.b16 %v215
      %v294 = vunpack.c.h.b16 %v215
      %v295 = vunpack.c.l.b16 %v216
      %v296 = vunpack.c.h.b16 %v216
      %v297 = vunpack.c.l.b16 %v217
      %v298 = vunpack.c.h.b16 %v217
      %v299 = vunpack.c.l.b16 %v218
      %v300 = vunpack.c.h.b16 %v218
      %v301 = vunpack.c.l.b16 %v219
      %v302 = vunpack.c.h.b16 %v219
      %v303 = vunpack.c.l.b16 %v220
      %v304 = vunpack.c.h.b16 %v220
      %v305 = vunpack.c.l.b16 %v221
      %v306 = vunpack.c.h.b16 %v221
      %v307 = vunpack.c.l.b16 %v222
      %v308 = vunpack.c.h.b16 %v222
      %v309 = vunpack.c.l.b16 %v223
      %v310 = vunpack.c.h.b16 %v223
      %v311 = vunpack.c.l.b16 %v224
      %v312 = vunpack.c.h.b16 %v224
      %v313 = vunpack.c.l.b16 %v225
      %v314 = vunpack.c.h.b16 %v225
      %v315 = vunpack.c.l.b16 %v226
      %v316 = vunpack.c.h.b16 %v226
      %v317 = vunpack.c.l.b16 %v227
      %v318 = vunpack.c.h.b16 %v227
      %v319 = vunpack.c.l.b16 %v228
      %v320 = vunpack.c.h.b16 %v228
      %v321 = vunpack.c.l.b16 %v229
      %v322 = vunpack.c.h.b16 %v229
      %v323 = vunpack.c.l.b16 %v230
      %v324 = vunpack.c.h.b16 %v230
      %v325 = vunpack.c.l.b16 %v231
      %v326 = vunpack.c.h.b16 %v231
      %v327 = vunpack.c.l.b16 %v232
      %v328 = vunpack.c.h.b16 %v232
      %v329 = vpack.c.b16 %v267, %v265
      %v330 = vpack.c.b16 %v268, %v266
      %v331 = vpack.c.b16 %v271, %v269
      %v332 = vpack.c.b16 %v272, %v270
      %v333 = vpack.c.b16 %v275, %v273
      %v334 = vpack.c.b16 %v276, %v274
      %v335 = vpack.c.b16 %v279, %v277
      %v336 = vpack.c.b16 %v280, %v278
      %v337 = vpack.c.b16 %v283, %v281
      %v338 = vpack.c.b16 %v284, %v282
      %v339 = vpack.c.b16 %v287, %v285
      %v340 = vpack.c.b16 %v288, %v286
      %v341 = vpack.c.b16 %v291, %v289
      %v342 = vpack.c.b16 %v292, %v290
      %v343 = vpack.c.b16 %v295, %v293
      %v344 = vpack.c.b16 %v296, %v294
      %v345 = vpack.c.b16 %v299, %v297
      %v346 = vpack.c.b16 %v300, %v298
      %v347 = vpack.c.b16 %v303, %v301
      %v348 = vpack.c.b16 %v304, %v302
      %v349 = vpack.c.b16 %v307, %v305
      %v350 = vpack.c.b16 %v308, %v306
      %v351 = vpack.c.b16 %v311, %v309
      %v352 = vpack.c.b16 %v312, %v310
      %v353 = vpack.c.b16 %v315, %v313
      %v354 = vpack.c.b16 %v316, %v314
      %v355 = vpack.c.b16 %v319, %v317
      %v356 = vpack.c.b16 %v320, %v318
      %v357 = vpack.c.b16 %v323, %v321
      %v358 = vpack.c.b16 %v324, %v322
      %v359 = vpack.c.b16 %v327, %v325
      %v360 = vpack.c.b16 %v328, %v326
      %v425 = vunpack.c.l.b16 %v137
      %v426 = vunpack.c.l.b16 %v138
      %v427 = vunpack.c.l.b16 %v139
      %v428 = vunpack.c.l.b16 %v140
      %v429 = vunpack.c.l.b16 %v141
      %v430 = vunpack.c.l.b16 %v142
      %v431 = vunpack.c.l.b16 %v143
      %v432 = vunpack.c.l.b16 %v144
      %v433 = vunpack.c.l.b16 %v145
      %v434 = vunpack.c.l.b16 %v146
      %v435 = vunpack.c.l.b16 %v147
      %v436 = vunpack.c.l.b16 %v148
      %v437 = vunpack.c.l.b16 %v149
      %v438 = vunpack.c.l.b16 %v150
      %v439 = vunpack.c.l.b16 %v151
      %v440 = vunpack.c.l.b16 %v152
      %v441 = vunpack.c.l.b16 %v153
      %v442 = vunpack.c.l.b16 %v154
      %v443 = vunpack.c.l.b16 %v155
      %v444 = vunpack.c.l.b16 %v156
      %v445 = vunpack.c.l.b16 %v157
      %v446 = vunpack.c.l.b16 %v158
      %v447 = vunpack.c.l.b16 %v159
      %v448 = vunpack.c.l.b16 %v160
      %v449 = vunpack.c.l.b16 %v161
      %v450 = vunpack.c.l.b16 %v162
      %v451 = vunpack.c.l.b16 %v163
      %v452 = vunpack.c.l.b16 %v164
      %v453 = vunpack.c.l.b16 %v165
      %v454 = vunpack.c.l.b16 %v166
      %v455 = vunpack.c.l.b16 %v167
      %v456 = vunpack.c.l.b16 %v168
      %v457 = vpack.c.b16 %v426, %v425
      %v458 = vpack.c.b16 %v428, %v427
      %v459 = vpack.c.b16 %v430, %v429
      %v460 = vpack.c.b16 %v432, %v431
      %v461 = vpack.c.b16 %v434, %v433
      %v462 = vpack.c.b16 %v436, %v435
      %v463 = vpack.c.b16 %v438, %v437
      %v464 = vpack.c.b16 %v440, %v439
      %v465 = vpack.c.b16 %v442, %v441
      %v466 = vpack.c.b16 %v444, %v443
      %v467 = vpack.c.b16 %v446, %v445
      %v468 = vpack.c.b16 %v448, %v447
      %v469 = vpack.c.b16 %v450, %v449
      %v470 = vpack.c.b16 %v452, %v451
      %v471 = vpack.c.b16 %v454, %v453
      %v472 = vpack.c.b16 %v456, %v455
      %489 = vmatpush.bf16.msra.mxu0 %v464
      %490 = vmatpush.bf16.msra.mxu0 %v463
      %491 = vmatpush.bf16.msra.mxu0 %v462
      %492 = vmatpush.bf16.msra.mxu0 %v461
      %493 = vmatpush.bf16.msra.mxu0 %v460
      %494 = vmatpush.bf16.msra.mxu0 %v459
      %495 = vmatpush.bf16.msra.mxu0 %v458
      %496 = vmatpush.bf16.msra.mxu0 %v457
      %497 = vmatmul.bf16.gmra.mxu0 %v329
      %v498 = vpop.f32.mrf.mxu0
      %v499 = vadd.f32 0.0, %v498
      %v500 = vpop.f32.mrf.mxu0
      %v501 = vadd.f32 0.0, %v500
      %502 = vmatmul.bf16.gmra.mxu0 %v331
      %v503 = vpop.f32.mrf.mxu0
      %v504 = vadd.f32 0.0, %v503
      %v505 = vpop.f32.mrf.mxu0
      %v506 = vadd.f32 0.0, %v505
      %507 = vmatmul.bf16.gmra.mxu0 %v333
      %v508 = vpop.f32.mrf.mxu0
      %v509 = vadd.f32 0.0, %v508
      %v510 = vpop.f32.mrf.mxu0
      %v511 = vadd.f32 0.0, %v510
      %512 = vmatmul.bf16.gmra.mxu0 %v335
      %v513 = vpop.f32.mrf.mxu0
      %v514 = vadd.f32 0.0, %v513
      %v515 = vpop.f32.mrf.mxu0
      %v516 = vadd.f32 0.0, %v515
      %517 = vmatmul.bf16.gmra.mxu0 %v337
      %v518 = vpop.f32.mrf.mxu0
      %v519 = vadd.f32 0.0, %v518
      %v520 = vpop.f32.mrf.mxu0
      %v521 = vadd.f32 0.0, %v520
      %522 = vmatmul.bf16.gmra.mxu0 %v339
      %v523 = vpop.f32.mrf.mxu0
      %v524 = vadd.f32 0.0, %v523
      %v525 = vpop.f32.mrf.mxu0
      %v526 = vadd.f32 0.0, %v525
      %527 = vmatmul.bf16.gmra.mxu0 %v341
      %v528 = vpop.f32.mrf.mxu0
      %v529 = vadd.f32 0.0, %v528
      %v530 = vpop.f32.mrf.mxu0
      %v531 = vadd.f32 0.0, %v530
      %532 = vmatmul.bf16.gmra.mxu0 %v343
      %v533 = vpop.f32.mrf.mxu0
      %v534 = vadd.f32 0.0, %v533
      %v535 = vpop.f32.mrf.mxu0
      %v536 = vadd.f32 0.0, %v535
      %537 = vmatmul.bf16.gmra.mxu0 %v345
      %v538 = vpop.f32.mrf.mxu0
      %v539 = vadd.f32 0.0, %v538
      %v540 = vpop.f32.mrf.mxu0
      %v541 = vadd.f32 0.0, %v540
      %542 = vmatmul.bf16.gmra.mxu0 %v347
      %v543 = vpop.f32.mrf.mxu0
      %v544 = vadd.f32 0.0, %v543
      %v545 = vpop.f32.mrf.mxu0
      %v546 = vadd.f32 0.0, %v545
      %547 = vmatmul.bf16.gmra.mxu0 %v349
      %v548 = vpop.f32.mrf.mxu0
      %v549 = vadd.f32 0.0, %v548
      %v550 = vpop.f32.mrf.mxu0
      %v551 = vadd.f32 0.0, %v550
      %552 = vmatmul.bf16.gmra.mxu0 %v351
      %v553 = vpop.f32.mrf.mxu0
      %v554 = vadd.f32 0.0, %v553
      %v555 = vpop.f32.mrf.mxu0
      %v556 = vadd.f32 0.0, %v555
      %557 = vmatmul.bf16.gmra.mxu0 %v353
      %v558 = vpop.f32.mrf.mxu0
      %v559 = vadd.f32 0.0, %v558
      %v560 = vpop.f32.mrf.mxu0
      %v561 = vadd.f32 0.0, %v560
      %562 = vmatmul.bf16.gmra.mxu0 %v355
      %v563 = vpop.f32.mrf.mxu0
      %v564 = vadd.f32 0.0, %v563
      %v565 = vpop.f32.mrf.mxu0
      %v566 = vadd.f32 0.0, %v565
      %567 = vmatmul.bf16.gmra.mxu0 %v357
      %v568 = vpop.f32.mrf.mxu0
      %v569 = vadd.f32 0.0, %v568
      %v570 = vpop.f32.mrf.mxu0
      %v571 = vadd.f32 0.0, %v570
      %572 = vmatmul.bf16.gmra.mxu0 %v359
      %v573 = vpop.f32.mrf.mxu0
      %v574 = vadd.f32 0.0, %v573
      %v575 = vpop.f32.mrf.mxu0
      %v576 = vadd.f32 0.0, %v575
      %577 = vdwg.mxu0
      %578 = vmatpush.bf16.msra.mxu0 %v472
      %579 = vmatpush.bf16.msra.mxu0 %v471
      %580 = vmatpush.bf16.msra.mxu0 %v470
      %581 = vmatpush.bf16.msra.mxu0 %v469
      %582 = vmatpush.bf16.msra.mxu0 %v468
      %583 = vmatpush.bf16.msra.mxu0 %v467
      %584 = vmatpush.bf16.msra.mxu0 %v466
      %585 = vmatpush.bf16.msra.mxu0 %v465
      %586 = vmatmul.bf16.gmra.mxu0 %v330
      %v587 = vpop.f32.mrf.mxu0
      %v588 = vadd.f32 %v499, %v587
      %v589 = vpop.f32.mrf.mxu0
      %v590 = vadd.f32 %v501, %v589
      %591 = vmatmul.bf16.gmra.mxu0 %v332
      %v592 = vpop.f32.mrf.mxu0
      %v593 = vadd.f32 %v504, %v592
      %v594 = vpop.f32.mrf.mxu0
      %v595 = vadd.f32 %v506, %v594
      %596 = vmatmul.bf16.gmra.mxu0 %v334
      %v597 = vpop.f32.mrf.mxu0
      %v598 = vadd.f32 %v509, %v597
      %v599 = vpop.f32.mrf.mxu0
      %v600 = vadd.f32 %v511, %v599
      %601 = vmatmul.bf16.gmra.mxu0 %v336
      %v602 = vpop.f32.mrf.mxu0
      %v603 = vadd.f32 %v514, %v602
      %v604 = vpop.f32.mrf.mxu0
      %v605 = vadd.f32 %v516, %v604
      %606 = vmatmul.bf16.gmra.mxu0 %v338
      %v607 = vpop.f32.mrf.mxu0
      %v608 = vadd.f32 %v519, %v607
      %v609 = vpop.f32.mrf.mxu0
      %v610 = vadd.f32 %v521, %v609
      %611 = vmatmul.bf16.gmra.mxu0 %v340
      %v612 = vpop.f32.mrf.mxu0
      %v613 = vadd.f32 %v524, %v612
      %v614 = vpop.f32.mrf.mxu0
      %v615 = vadd.f32 %v526, %v614
      %616 = vmatmul.bf16.gmra.mxu0 %v342
      %v617 = vpop.f32.mrf.mxu0
      %v618 = vadd.f32 %v529, %v617
      %v619 = vpop.f32.mrf.mxu0
      %v620 = vadd.f32 %v531, %v619
      %621 = vmatmul.bf16.gmra.mxu0 %v344
      %v622 = vpop.f32.mrf.mxu0
      %v623 = vadd.f32 %v534, %v622
      %v624 = vpop.f32.mrf.mxu0
      %v625 = vadd.f32 %v536, %v624
      %626 = vmatmul.bf16.gmra.mxu0 %v346
      %v627 = vpop.f32.mrf.mxu0
      %v628 = vadd.f32 %v539, %v627
      %v629 = vpop.f32.mrf.mxu0
      %v630 = vadd.f32 %v541, %v629
      %631 = vmatmul.bf16.gmra.mxu0 %v348
      %v632 = vpop.f32.mrf.mxu0
      %v633 = vadd.f32 %v544, %v632
      %v634 = vpop.f32.mrf.mxu0
      %v635 = vadd.f32 %v546, %v634
      %636 = vmatmul.bf16.gmra.mxu0 %v350
      %v637 = vpop.f32.mrf.mxu0
      %v638 = vadd.f32 %v549, %v637
      %v639 = vpop.f32.mrf.mxu0
      %v640 = vadd.f32 %v551, %v639
      %641 = vmatmul.bf16.gmra.mxu0 %v352
      %v642 = vpop.f32.mrf.mxu0
      %v643 = vadd.f32 %v554, %v642
      %v644 = vpop.f32.mrf.mxu0
      %v645 = vadd.f32 %v556, %v644
      %646 = vmatmul.bf16.gmra.mxu0 %v354
      %v647 = vpop.f32.mrf.mxu0
      %v648 = vadd.f32 %v559, %v647
      %v649 = vpop.f32.mrf.mxu0
      %v650 = vadd.f32 %v561, %v649
      %651 = vmatmul.bf16.gmra.mxu0 %v356
      %v652 = vpop.f32.mrf.mxu0
      %v653 = vadd.f32 %v564, %v652
      %v654 = vpop.f32.mrf.mxu0
      %v655 = vadd.f32 %v566, %v654
      %656 = vmatmul.bf16.gmra.mxu0 %v358
      %v657 = vpop.f32.mrf.mxu0
      %v658 = vadd.f32 %v569, %v657
      %v659 = vpop.f32.mrf.mxu0
      %v660 = vadd.f32 %v571, %v659
      %661 = vmatmul.bf16.gmra.mxu0 %v360
      %v662 = vpop.f32.mrf.mxu0
      %v663 = vadd.f32 %v574, %v662
      %v664 = vpop.f32.mrf.mxu0
      %v665 = vadd.f32 %v576, %v664
      %666 = vdwg.mxu0
      %v667 = vadd.f32 %v169, %v588
      %v668 = vadd.f32 %v170, %v590
      %v669 = vadd.f32 %v171, %v593
      %v670 = vadd.f32 %v172, %v595
      %v671 = vadd.f32 %v173, %v598
      %v672 = vadd.f32 %v174, %v600
      %v673 = vadd.f32 %v175, %v603
      %v674 = vadd.f32 %v176, %v605
      %v675 = vadd.f32 %v177, %v608
      %v676 = vadd.f32 %v178, %v610
      %v677 = vadd.f32 %v179, %v613
      %v678 = vadd.f32 %v180, %v615
      %v679 = vadd.f32 %v181, %v618
      %v680 = vadd.f32 %v182, %v620
      %v681 = vadd.f32 %v183, %v623
      %v682 = vadd.f32 %v184, %v625
      %v683 = vadd.f32 %v185, %v628
      %v684 = vadd.f32 %v186, %v630
      %v685 = vadd.f32 %v187, %v633
      %v686 = vadd.f32 %v188, %v635
      %v687 = vadd.f32 %v189, %v638
      %v688 = vadd.f32 %v190, %v640
      %v689 = vadd.f32 %v191, %v643
      %v690 = vadd.f32 %v192, %v645
      %v691 = vadd.f32 %v193, %v648
      %v692 = vadd.f32 %v194, %v650
      %v693 = vadd.f32 %v195, %v653
      %v694 = vadd.f32 %v196, %v655
      %v695 = vadd.f32 %v197, %v658
      %v696 = vadd.f32 %v198, %v660
      %v697 = vadd.f32 %v199, %v663
      %v698 = vadd.f32 %v200, %v665
      %699 = vst [vmem:[#allocation2] sm:$0xff] %v667
      %700 = vst [vmem:[#allocation2 + $0x8] sm:$0xff] %v668
      %701 = vst [vmem:[#allocation2 + $0x10] sm:$0xff] %v669
      %702 = vst [vmem:[#allocation2 + $0x18] sm:$0xff] %v670
      %703 = vst [vmem:[#allocation2 + $0x20] sm:$0xff] %v671
      %704 = vst [vmem:[#allocation2 + $0x28] sm:$0xff] %v672
      %705 = vst [vmem:[#allocation2 + $0x30] sm:$0xff] %v673
      %706 = vst [vmem:[#allocation2 + $0x38] sm:$0xff] %v674
      %707 = vst [vmem:[#allocation2 + $0x40] sm:$0xff] %v675
      %708 = vst [vmem:[#allocation2 + $0x48] sm:$0xff] %v676
      %709 = vst [vmem:[#allocation2 + $0x50] sm:$0xff] %v677
      %710 = vst [vmem:[#allocation2 + $0x58] sm:$0xff] %v678
      %711 = vst [vmem:[#allocation2 + $0x60] sm:$0xff] %v679
      %712 = vst [vmem:[#allocation2 + $0x68] sm:$0xff] %v680
      %713 = vst [vmem:[#allocation2 + $0x70] sm:$0xff] %v681
      %714 = vst [vmem:[#allocation2 + $0x78] sm:$0xff] %v682
      %715 = vst [vmem:[#allocation2 + $0x80] sm:$0xff] %v683
      %716 = vst [vmem:[#allocation2 + $0x88] sm:$0xff] %v684
      %717 = vst [vmem:[#allocation2 + $0x90] sm:$0xff] %v685
      %718 = vst [vmem:[#allocation2 + $0x98] sm:$0xff] %v686
      %719 = vst [vmem:[#allocation2 + $0xa0] sm:$0xff] %v687
      %720 = vst [vmem:[#allocation2 + $0xa8] sm:$0xff] %v688
      %721 = vst [vmem:[#allocation2 + $0xb0] sm:$0xff] %v689
      %722 = vst [vmem:[#allocation2 + $0xb8] sm:$0xff] %v690
      %723 = vst [vmem:[#allocation2 + $0xc0] sm:$0xff] %v691
      %724 = vst [vmem:[#allocation2 + $0xc8] sm:$0xff] %v692
      %725 = vst [vmem:[#allocation2 + $0xd0] sm:$0xff] %v693
      %726 = vst [vmem:[#allocation2 + $0xd8] sm:$0xff] %v694
      %727 = vst [vmem:[#allocation2 + $0xe0] sm:$0xff] %v695
      %728 = vst [vmem:[#allocation2 + $0xe8] sm:$0xff] %v696
      %729 = vst [vmem:[#allocation2 + $0xf0] sm:$0xff] %v697
      %730 = vst [vmem:[#allocation2 + $0xf8] sm:$0xff] %v698
    $region37: #{tpu_custom_call.1} parent=1 // pred_fallthru
      _
    // Predicated region
    $region38: #{tpu_custom_call.1} parent=1 // pred_check
      %p731 = pneg %p85
    $region39: #{tpu_custom_call.1} parent=1 // pred_check_branch
      %733 = sbr.rel (%p731) target = $region41
    $region40: #{tpu_custom_call.1} parent=1 // pred_region
      %v734 = vld [vmem:[#allocation2] sm:$0xff]
      %v735 = vld [vmem:[#allocation2 + $0x8] sm:$0xff]
      %v736 = vld [vmem:[#allocation2 + $0x10] sm:$0xff]
      %v737 = vld [vmem:[#allocation2 + $0x18] sm:$0xff]
      %v738 = vld [vmem:[#allocation2 + $0x20] sm:$0xff]
      %v739 = vld [vmem:[#allocation2 + $0x28] sm:$0xff]
      %v740 = vld [vmem:[#allocation2 + $0x30] sm:$0xff]
      %v741 = vld [vmem:[#allocation2 + $0x38] sm:$0xff]
      %v742 = vld [vmem:[#allocation2 + $0x40] sm:$0xff]
      %v743 = vld [vmem:[#allocation2 + $0x48] sm:$0xff]
      %v744 = vld [vmem:[#allocation2 + $0x50] sm:$0xff]
      %v745 = vld [vmem:[#allocation2 + $0x58] sm:$0xff]
      %v746 = vld [vmem:[#allocation2 + $0x60] sm:$0xff]
      %v747 = vld [vmem:[#allocation2 + $0x68] sm:$0xff]
      %v748 = vld [vmem:[#allocation2 + $0x70] sm:$0xff]
      %v749 = vld [vmem:[#allocation2 + $0x78] sm:$0xff]
      %v750 = vld [vmem:[#allocation2 + $0x80] sm:$0xff]
      %v751 = vld [vmem:[#allocation2 + $0x88] sm:$0xff]
      %v752 = vld [vmem:[#allocation2 + $0x90] sm:$0xff]
      %v753 = vld [vmem:[#allocation2 + $0x98] sm:$0xff]
      %v754 = vld [vmem:[#allocation2 + $0xa0] sm:$0xff]
      %v755 = vld [vmem:[#allocation2 + $0xa8] sm:$0xff]
      %v756 = vld [vmem:[#allocation2 + $0xb0] sm:$0xff]
      %v757 = vld [vmem:[#allocation2 + $0xb8] sm:$0xff]
      %v758 = vld [vmem:[#allocation2 + $0xc0] sm:$0xff]
      %v759 = vld [vmem:[#allocation2 + $0xc8] sm:$0xff]
      %v760 = vld [vmem:[#allocation2 + $0xd0] sm:$0xff]
      %v761 = vld [vmem:[#allocation2 + $0xd8] sm:$0xff]
      %v762 = vld [vmem:[#allocation2 + $0xe0] sm:$0xff]
      %v763 = vld [vmem:[#allocation2 + $0xe8] sm:$0xff]
      %v764 = vld [vmem:[#allocation2 + $0xf0] sm:$0xff]
      %v765 = vld [vmem:[#allocation2 + $0xf8] sm:$0xff]
      %v766 = vld [vmem:[#allocation11] sm:$0xff]
      %v767 = vld [vmem:[#allocation11 + $0x8] sm:$0xff]
      %v768 = vld [vmem:[#allocation11 + $0x10] sm:$0xff]
      %v769 = vld [vmem:[#allocation11 + $0x18] sm:$0xff]
      %v770 = vld [vmem:[#allocation11 + $0x20] sm:$0xff]
      %v771 = vld [vmem:[#allocation11 + $0x28] sm:$0xff]
      %v772 = vld [vmem:[#allocation11 + $0x30] sm:$0xff]
      %v773 = vld [vmem:[#allocation11 + $0x38] sm:$0xff]
      %v774 = vld [vmem:[#allocation11 + $0x40] sm:$0xff]
      %v775 = vld [vmem:[#allocation11 + $0x48] sm:$0xff]
      %v776 = vld [vmem:[#allocation11 + $0x50] sm:$0xff]
      %v777 = vld [vmem:[#allocation11 + $0x58] sm:$0xff]
      %v778 = vld [vmem:[#allocation11 + $0x60] sm:$0xff]
      %v779 = vld [vmem:[#allocation11 + $0x68] sm:$0xff]
      %v780 = vld [vmem:[#allocation11 + $0x70] sm:$0xff]
      %v781 = vld [vmem:[#allocation11 + $0x78] sm:$0xff]
      %v782 = vld [vmem:[%s5] sm:$0x1]
      %v784 = vperm.slane %v782, 0
      %786 = vmatpush.msra.mxu0 %v781
      %787 = vmatpush.msra.mxu0 %v780
      %788 = vmatpush.msra.mxu0 %v779
      %789 = vmatpush.msra.mxu0 %v778
      %790 = vmatpush.msra.mxu0 %v777
      %791 = vmatpush.msra.mxu0 %v776
      %792 = vmatpush.msra.mxu0 %v775
      %793 = vmatpush.msra.mxu0 %v774
      %794 = vmatpush.msra.mxu0 %v773
      %795 = vmatpush.msra.mxu0 %v772
      %796 = vmatpush.msra.mxu0 %v771
      %797 = vmatpush.msra.mxu0 %v770
      %798 = vmatpush.msra.mxu0 %v769
      %799 = vmatpush.msra.mxu0 %v768
      %800 = vmatpush.msra.mxu0 %v767
      %801 = vmatpush.msra.mxu0 %v766
      %802 = vmatmul.f32.gmra.mxu0 %v734
      %v803 = vpop.f32.mrf.mxu0
      %v804 = vadd.f32 %v784, %v803
      %805 = vmatmul.f32.gmra.mxu0 %v735
      %v806 = vpop.f32.mrf.mxu0
      %v807 = vadd.f32 %v784, %v806
      %808 = vmatmul.f32.gmra.mxu0 %v736
      %v809 = vpop.f32.mrf.mxu0
      %v810 = vadd.f32 %v784, %v809
      %811 = vmatmul.f32.gmra.mxu0 %v737
      %v812 = vpop.f32.mrf.mxu0
      %v813 = vadd.f32 %v784, %v812
      %814 = vmatmul.f32.gmra.mxu0 %v738
      %v815 = vpop.f32.mrf.mxu0
      %v816 = vadd.f32 %v784, %v815
      %817 = vmatmul.f32.gmra.mxu0 %v739
      %v818 = vpop.f32.mrf.mxu0
      %v819 = vadd.f32 %v784, %v818
      %820 = vmatmul.f32.gmra.mxu0 %v740
      %v821 = vpop.f32.mrf.mxu0
      %v822 = vadd.f32 %v784, %v821
      %823 = vmatmul.f32.gmra.mxu0 %v741
      %v824 = vpop.f32.mrf.mxu0
      %v825 = vadd.f32 %v784, %v824
      %826 = vmatmul.f32.gmra.mxu0 %v742
      %v827 = vpop.f32.mrf.mxu0
      %v828 = vadd.f32 %v784, %v827
      %829 = vmatmul.f32.gmra.mxu0 %v743
      %v830 = vpop.f32.mrf.mxu0
      %v831 = vadd.f32 %v784, %v830
      %832 = vmatmul.f32.gmra.mxu0 %v744
      %v833 = vpop.f32.mrf.mxu0
      %v834 = vadd.f32 %v784, %v833
      %835 = vmatmul.f32.gmra.mxu0 %v745
      %v836 = vpop.f32.mrf.mxu0
      %v837 = vadd.f32 %v784, %v836
      %838 = vmatmul.f32.gmra.mxu0 %v746
      %v839 = vpop.f32.mrf.mxu0
      %v840 = vadd.f32 %v784, %v839
      %841 = vmatmul.f32.gmra.mxu0 %v747
      %v842 = vpop.f32.mrf.mxu0
      %v843 = vadd.f32 %v784, %v842
      %844 = vmatmul.f32.gmra.mxu0 %v748
      %v845 = vpop.f32.mrf.mxu0
      %v846 = vadd.f32 %v784, %v845
      %847 = vmatmul.f32.gmra.mxu0 %v749
      %v848 = vpop.f32.mrf.mxu0
      %v849 = vadd.f32 %v784, %v848
      %850 = vmatmul.f32.gmra.mxu0 %v750
      %v851 = vpop.f32.mrf.mxu0
      %v852 = vadd.f32 %v784, %v851
      %853 = vmatmul.f32.gmra.mxu0 %v751
      %v854 = vpop.f32.mrf.mxu0
      %v855 = vadd.f32 %v784, %v854
      %856 = vmatmul.f32.gmra.mxu0 %v752
      %v857 = vpop.f32.mrf.mxu0
      %v858 = vadd.f32 %v784, %v857
      %859 = vmatmul.f32.gmra.mxu0 %v753
      %v860 = vpop.f32.mrf.mxu0
      %v861 = vadd.f32 %v784, %v860
      %862 = vmatmul.f32.gmra.mxu0 %v754
      %v863 = vpop.f32.mrf.mxu0
      %v864 = vadd.f32 %v784, %v863
      %865 = vmatmul.f32.gmra.mxu0 %v755
      %v866 = vpop.f32.mrf.mxu0
      %v867 = vadd.f32 %v784, %v866
      %868 = vmatmul.f32.gmra.mxu0 %v756
      %v869 = vpop.f32.mrf.mxu0
      %v870 = vadd.f32 %v784, %v869
      %871 = vmatmul.f32.gmra.mxu0 %v757
      %v872 = vpop.f32.mrf.mxu0
      %v873 = vadd.f32 %v784, %v872
      %874 = vmatmul.f32.gmra.mxu0 %v758
      %v875 = vpop.f32.mrf.mxu0
      %v876 = vadd.f32 %v784, %v875
      %877 = vmatmul.f32.gmra.mxu0 %v759
      %v878 = vpop.f32.mrf.mxu0
      %v879 = vadd.f32 %v784, %v878
      %880 = vmatmul.f32.gmra.mxu0 %v760
      %v881 = vpop.f32.mrf.mxu0
      %v882 = vadd.f32 %v784, %v881
      %883 = vmatmul.f32.gmra.mxu0 %v761
      %v884 = vpop.f32.mrf.mxu0
      %v885 = vadd.f32 %v784, %v884
      %886 = vmatmul.f32.gmra.mxu0 %v762
      %v887 = vpop.f32.mrf.mxu0
      %v888 = vadd.f32 %v784, %v887
      %889 = vmatmul.f32.gmra.mxu0 %v763
      %v890 = vpop.f32.mrf.mxu0
      %v891 = vadd.f32 %v784, %v890
      %892 = vmatmul.f32.gmra.mxu0 %v764
      %v893 = vpop.f32.mrf.mxu0
      %v894 = vadd.f32 %v784, %v893
      %895 = vmatmul.f32.gmra.mxu0 %v765
      %v896 = vpop.f32.mrf.mxu0
      %v897 = vadd.f32 %v784, %v896
      %898 = vdwg.mxu0
      %v899 = vmax.f32 %v804, 0.0
      %v900 = vmax.f32 %v807, 0.0
      %v901 = vmax.f32 %v810, 0.0
      %v902 = vmax.f32 %v813, 0.0
      %v903 = vmax.f32 %v816, 0.0
      %v904 = vmax.f32 %v819, 0.0
      %v905 = vmax.f32 %v822, 0.0
      %v906 = vmax.f32 %v825, 0.0
      %v907 = vmax.f32 %v828, 0.0
      %v908 = vmax.f32 %v831, 0.0
      %v909 = vmax.f32 %v834, 0.0
      %v910 = vmax.f32 %v837, 0.0
      %v911 = vmax.f32 %v840, 0.0
      %v912 = vmax.f32 %v843, 0.0
      %v913 = vmax.f32 %v846, 0.0
      %v914 = vmax.f32 %v849, 0.0
      %v915 = vmax.f32 %v852, 0.0
      %v916 = vmax.f32 %v855, 0.0
      %v917 = vmax.f32 %v858, 0.0
      %v918 = vmax.f32 %v861, 0.0
      %v919 = vmax.f32 %v864, 0.0
      %v920 = vmax.f32 %v867, 0.0
      %v921 = vmax.f32 %v870, 0.0
      %v922 = vmax.f32 %v873, 0.0
      %v923 = vmax.f32 %v876, 0.0
      %v924 = vmax.f32 %v879, 0.0
      %v925 = vmax.f32 %v882, 0.0
      %v926 = vmax.f32 %v885, 0.0
      %v927 = vmax.f32 %v888, 0.0
      %v928 = vmax.f32 %v891, 0.0
      %v929 = vmax.f32 %v894, 0.0
      %v930 = vmax.f32 %v897, 0.0
      %v931 = vpack.c.bf16 %v899, %v899
      %v932 = vpack.c.bf16 %v900, %v900
      %v933 = vpack.c.bf16 %v901, %v901
      %v934 = vpack.c.bf16 %v902, %v902
      %v935 = vpack.c.bf16 %v903, %v903
      %v936 = vpack.c.bf16 %v904, %v904
      %v937 = vpack.c.bf16 %v905, %v905
      %v938 = vpack.c.bf16 %v906, %v906
      %v939 = vpack.c.bf16 %v907, %v907
      %v940 = vpack.c.bf16 %v908, %v908
      %v941 = vpack.c.bf16 %v909, %v909
      %v942 = vpack.c.bf16 %v910, %v910
      %v943 = vpack.c.bf16 %v911, %v911
      %v944 = vpack.c.bf16 %v912, %v912
      %v945 = vpack.c.bf16 %v913, %v913
      %v946 = vpack.c.bf16 %v914, %v914
      %v947 = vpack.c.bf16 %v915, %v915
      %v948 = vpack.c.bf16 %v916, %v916
      %v949 = vpack.c.bf16 %v917, %v917
      %v950 = vpack.c.bf16 %v918, %v918
      %v951 = vpack.c.bf16 %v919, %v919
      %v952 = vpack.c.bf16 %v920, %v920
      %v953 = vpack.c.bf16 %v921, %v921
      %v954 = vpack.c.bf16 %v922, %v922
      %v955 = vpack.c.bf16 %v923, %v923
      %v956 = vpack.c.bf16 %v924, %v924
      %v957 = vpack.c.bf16 %v925, %v925
      %v958 = vpack.c.bf16 %v926, %v926
      %v959 = vpack.c.bf16 %v927, %v927
      %v960 = vpack.c.bf16 %v928, %v928
      %v961 = vpack.c.bf16 %v929, %v929
      %v962 = vpack.c.bf16 %v930, %v930
      %963 = vst [vmem:[#allocation12] sm:$0xf] %v931
      %964 = vst [vmem:[#allocation12 + $0x4] sm:$0xf] %v932
      %965 = vst [vmem:[#allocation12 + $0x8] sm:$0xf] %v933
      %966 = vst [vmem:[#allocation12 + $0xc] sm:$0xf] %v934
      %967 = vst [vmem:[#allocation12 + $0x10] sm:$0xf] %v935
      %968 = vst [vmem:[#allocation12 + $0x14] sm:$0xf] %v936
      %969 = vst [vmem:[#allocation12 + $0x18] sm:$0xf] %v937
      %970 = vst [vmem:[#allocation12 + $0x1c] sm:$0xf] %v938
      %971 = vst [vmem:[#allocation12 + $0x20] sm:$0xf] %v939
      %972 = vst [vmem:[#allocation12 + $0x24] sm:$0xf] %v940
      %973 = vst [vmem:[#allocation12 + $0x28] sm:$0xf] %v941
      %974 = vst [vmem:[#allocation12 + $0x2c] sm:$0xf] %v942
      %975 = vst [vmem:[#allocation12 + $0x30] sm:$0xf] %v943
      %976 = vst [vmem:[#allocation12 + $0x34] sm:$0xf] %v944
      %977 = vst [vmem:[#allocation12 + $0x38] sm:$0xf] %v945
      %978 = vst [vmem:[#allocation12 + $0x3c] sm:$0xf] %v946
      %979 = vst [vmem:[#allocation12 + $0x40] sm:$0xf] %v947
      %980 = vst [vmem:[#allocation12 + $0x44] sm:$0xf] %v948
      %981 = vst [vmem:[#allocation12 + $0x48] sm:$0xf] %v949
      %982 = vst [vmem:[#allocation12 + $0x4c] sm:$0xf] %v950
      %983 = vst [vmem:[#allocation12 + $0x50] sm:$0xf] %v951
      %984 = vst [vmem:[#allocation12 + $0x54] sm:$0xf] %v952
      %985 = vst [vmem:[#allocation12 + $0x58] sm:$0xf] %v953
      %986 = vst [vmem:[#allocation12 + $0x5c] sm:$0xf] %v954
      %987 = vst [vmem:[#allocation12 + $0x60] sm:$0xf] %v955
      %988 = vst [vmem:[#allocation12 + $0x64] sm:$0xf] %v956
      %989 = vst [vmem:[#allocation12 + $0x68] sm:$0xf] %v957
      %990 = vst [vmem:[#allocation12 + $0x6c] sm:$0xf] %v958
      %991 = vst [vmem:[#allocation12 + $0x70] sm:$0xf] %v959
      %992 = vst [vmem:[#allocation12 + $0x74] sm:$0xf] %v960
      %993 = vst [vmem:[#allocation12 + $0x78] sm:$0xf] %v961
      %994 = vst [vmem:[#allocation12 + $0x7c] sm:$0xf] %v962
    $region41: #{tpu_custom_call.1} parent=1 // pred_fallthru
      _
    // Predicated region
    $region42: #{tpu_custom_call.1} parent=1 // pred_check
      _
    $region43: #{tpu_custom_call.1} parent=1 // pred_check_branch
      %996 = sbr.rel (0) target = $region45
    $region44: #{tpu_custom_call.1} parent=1 // pred_region
      %998 = vsyncadd [#allocation8], 0
      %s999 = sshll.u32 [#allocation12], 4
      %s1000 = int_to_ptr.vmem [resolvable:$true] %s999
      %s1001 = sshll.u32 %s6, 4
      %s1002 = int_to_ptr.hbm [resolvable:$true] %s1001
      %1007 = dma.vmem_to_hbm [thread:$0]  %s1000, 2048, %s1002, [#allocation8], 64, 64, 4
    $region45: #{tpu_custom_call.1} parent=1 // pred_fallthru
      _
    // Predicated region
    $region46: #{tpu_custom_call.1} parent=1 // pred_check
      _
    $region47: #{tpu_custom_call.1} parent=1 // pred_check_branch
      %1009 = sbr.rel (0) target = $region49
    $region48: #{tpu_custom_call.1} parent=1 // pred_region
      %1011 = dma.done [#allocation8], 2048
    $region49: #{tpu_custom_call.1} parent=1 // pred_fallthru
      _
    %1012 = vsyncpa [#allocation7], 1
    %1013 = vsyncpa [#allocation10], 1
    %1014 = vsyncpa [#allocation8], 1

</llo_original>
